<compile_context>
chip_gen: v5e
topology: v5e:2x2
jax: 0.10.0
libtpu: 0.0.40
codegen_flags: <defaults>
</compile_context>

<pallas_src>
import functools

import jax
import jax.numpy as jnp
from jax import lax
from jax.experimental import pallas as pl
from jax.experimental.pallas import tpu as pltpu

N_EMBD = 128      # fixed by the PyTorch module
BLOCK_SIZE = 256  # max sequence length in the PyTorch module (only tril[:T,:T] is used)


def _head_kernel(x_ref, w_ref, o_ref, *, head_size, scale, use_bf16):
    # x_ref: (Bblk, T, C) block; w_ref: fused (C, 3H) weight; o_ref: (Bblk, T, H).
    bblk, T, C = x_ref.shape
    H = head_size

    x2 = x_ref[...].reshape(bblk * T, C)           # (Bblk*T, C) -- big M for the MXU
    w = w_ref[...]                                 # (C, 3H)
    if use_bf16:
        x2 = x2.astype(jnp.bfloat16)
        w = w.astype(jnp.bfloat16)

    # Fused K/Q/V projection: one matmul with N = 3H instead of three N = H matmuls.
    kqv = jnp.dot(x2, w, preferred_element_type=jnp.float32)      # (Bblk*T, 3H) f32
    kqv = kqv.reshape(bblk, T, 3 * H)
    k = kqv[:, :, :H]                                             # (Bblk, T, H)
    q = kqv[:, :, H:2 * H] * scale                                # scale q, not wei
    v = kqv[:, :, 2 * H:]

    qm = q.astype(jnp.bfloat16) if use_bf16 else q
    km = k.astype(jnp.bfloat16) if use_bf16 else k

    # Scores: contract last dims of q and k directly (no explicit transpose).
    s = jnp.einsum('bqd,bkd->bqk', qm, km,
                   preferred_element_type=jnp.float32)            # (Bblk, T, T)

    # Causal mask, built once per grid step and broadcast over the batch block.
    row = lax.broadcasted_iota(jnp.int32, (T, T), 0)
    col = lax.broadcasted_iota(jnp.int32, (T, T), 1)
    s = jnp.where((col <= row)[None, :, :], s, -jnp.inf)

    # Numerically stable softmax in f32; normalization deferred to the output.
    m = jnp.max(s, axis=-1, keepdims=True)
    e = jnp.exp(s - m)
    ssum = jnp.sum(e, axis=-1, keepdims=True)                     # (Bblk, T, 1)
    inv = pl.reciprocal(ssum, approx=use_bf16)

    em = e.astype(jnp.bfloat16) if use_bf16 else e
    vm = v.astype(jnp.bfloat16) if use_bf16 else v
    out = jnp.einsum('bqk,bkd->bqd', em, vm,
                     preferred_element_type=jnp.float32)          # (Bblk, T, H)

    # dropout(p=0.0) is identity
    o_ref[...] = (out * inv).astype(o_ref.dtype)


def _pick_bblk(B, T, target_rows=512):
    """Largest divisor of B such that Bblk*T ~ target_rows and the grid keeps >=2 steps."""
    cap = max(1, target_rows // max(T, 1))
    if B >= 2:
        cap = min(cap, B // 2)   # keep at least 2 grid steps (v7x has 2 TensorCores)
    cap = max(cap, 1)
    best = 1
    for d in range(1, cap + 1):
        if B % d == 0:
            best = d
    return best


@functools.partial(jax.jit, static_argnames=("use_bf16",))
def head_forward(x, wk, wq, wv, use_bf16=False):
    """x: (B, T, C) f32; wk/wq/wv: (C, H) f32 (pre-transposed nn.Linear weights)."""
    B, T, C = x.shape
    H = wk.shape[1]
    scale = C ** -0.5                               # C = n_embd, exactly like the reference

    w_kqv = jnp.concatenate([wk, wq, wv], axis=1)   # (C, 3H) fused projection weight

    bblk = _pick_bblk(B, T)
    grid = (B // bblk,)

    kernel = functools.partial(_head_kernel, head_size=H, scale=scale, use_bf16=use_bf16)

    # TODO(synk): output last dim is H=32 (<128 lanes) -> masked stores; a true fix needs
    # the multi-head fusion done one level up (all heads in one kernel, last dim = n_head*H).
    return pl.pallas_call(
        kernel,
        out_shape=jax.ShapeDtypeStruct((B, T, H), x.dtype),
        grid_spec=pltpu.PrefetchScalarGridSpec(
            num_scalar_prefetch=0,
            grid=grid,
            in_specs=[
                pl.BlockSpec((bblk, T, C), lambda b: (b, 0, 0)),
                pl.BlockSpec((C, 3 * H), lambda b: (0, 0)),   # constant block index
            ],
            out_specs=pl.BlockSpec((bblk, T, H), lambda b: (b, 0, 0)),
        ),
        compiler_params=pltpu.CompilerParams(
            dimension_semantics=("parallel",),
        ),
    )(x, w_kqv)


def _reference(x, wk, wq, wv):
    """Pure-JAX reference mirroring the PyTorch forward."""
    B, T, C = x.shape
    k = x @ wk
    q = x @ wq
    v = x @ wv
    wei = (q @ jnp.swapaxes(k, -2, -1)) * (C ** -0.5)
    tril = jnp.tril(jnp.ones((T, T), dtype=x.dtype))
    wei = jnp.where(tril == 0, -jnp.inf, wei)
    wei = jax.nn.softmax(wei, axis=-1)
    return wei @ v


if __name__ == "__main__":
    B, T, C, H = 2, 8, N_EMBD, 32  # small shapes; C fixed at n_embd=128 by the module

    key = jax.random.PRNGKey(0)
    kx, kk, kq, kv = jax.random.split(key, 4)

    x = jax.random.normal(kx, (B, T, C), dtype=jnp.float32)
    # nn.Linear(n_embd, head_size).weight has shape (H, C); we store W.T = (C, H).
    init_scale = 1.0 / (C ** 0.5)
    wk = jax.random.uniform(kk, (C, H), dtype=jnp.float32, minval=-init_scale, maxval=init_scale)
    wq = jax.random.uniform(kq, (C, H), dtype=jnp.float32, minval=-init_scale, maxval=init_scale)
    wv = jax.random.uniform(kv, (C, H), dtype=jnp.float32, minval=-init_scale, maxval=init_scale)

    ref = _reference(x, wk, wq, wv)

    # Exact (f32) path: must match the PyTorch-equivalent reference tightly.
    out = jax.block_until_ready(head_forward(x, wk, wq, wv, use_bf16=False))
    assert out.shape == (B, T, H)
    assert jnp.allclose(out, ref, atol=1e-5, rtol=1e-5), "f32 path mismatch vs reference"

    # bf16-operand / f32-accumulate path (MXU fast path on v5e/v6e/v7x): loose tolerance.
    out_bf16 = jax.block_until_ready(head_forward(x, wk, wq, wv, use_bf16=True))
    assert out_bf16.shape == (B, T, H)
    assert jnp.allclose(out_bf16, ref, atol=1e-1, rtol=1e-1), "bf16 path mismatch vs reference"

    print("KERNEL_OK")
</pallas_src>

<mosaic_0001>
module attributes {stable_mosaic.version = 11 : i64} {
  func.func @_head_kernel(%arg0: i32, %arg1: memref<1x8x128xf32, #tpu.memory_space<vmem>>, %arg2: memref<128x96xf32, #tpu.memory_space<vmem>>, %arg3: memref<1x8x32xf32, #tpu.memory_space<vmem>>) attributes {dimension_semantics = [#tpu.dimension_semantics<parallel>], iteration_bounds = array<i64: 2>, scalar_prefetch = 0 : i64, scratch_operands = 0 : i64, tpu.core_type = #tpu.core_type<tc>, window_params = [{transform_indices = @transform_0, window_bounds = array<i64: 1, 8, 128>}, {pipeline_mode = #tpu.pipeline_mode<synchronous>, transform_indices = @transform_1, window_bounds = array<i64: 128, 96>}, {transform_indices = @transform_2, window_bounds = array<i64: 1, 8, 32>}]} {
    %c0 = arith.constant 0 : index
    %c0_0 = arith.constant 0 : index
    %c0_1 = arith.constant 0 : index
    %0 = vector.load %arg1[%c0, %c0_0, %c0_1] : memref<1x8x128xf32, #tpu.memory_space<vmem>>, vector<1x8x128xf32>
    %1 = vector.shape_cast %0 : vector<1x8x128xf32> to vector<8x128xf32>
    %c0_2 = arith.constant 0 : index
    %c0_3 = arith.constant 0 : index
    %2 = vector.load %arg2[%c0_2, %c0_3] : memref<128x96xf32, #tpu.memory_space<vmem>>, vector<128x96xf32>
    %cst = arith.constant dense<0.000000e+00> : vector<8x96xf32>
    %3 = tpu.matmul %1, %2, %cst {dimension_numbers = #tpu.dot_dimension_numbers<[1], [0], [0], [1], [0, 0, 1, 1], [], []>} : vector<8x128xf32>, vector<128x96xf32>, vector<8x96xf32> -> vector<8x96xf32>
    %4 = vector.shape_cast %3 : vector<8x96xf32> to vector<1x8x96xf32>
    %5 = vector.extract_strided_slice %4 {offsets = [0, 0, 0], sizes = [1, 8, 32], strides = [1, 1, 1]} : vector<1x8x96xf32> to vector<1x8x32xf32>
    %6 = vector.extract_strided_slice %4 {offsets = [0, 0, 32], sizes = [1, 8, 32], strides = [1, 1, 1]} : vector<1x8x96xf32> to vector<1x8x32xf32>
    %cst_4 = arith.constant 0.0883883461 : f32
    %7 = vector.broadcast %cst_4 : f32 to vector<1x8x32xf32>
    %8 = arith.mulf %6, %7 : vector<1x8x32xf32>
    %9 = vector.extract_strided_slice %4 {offsets = [0, 0, 64], sizes = [1, 8, 32], strides = [1, 1, 1]} : vector<1x8x96xf32> to vector<1x8x32xf32>
    "tpu.trace_start"() <{level = 10 : i32, message = "bqd,bkd->bqk"}> : () -> ()
    %cst_5 = arith.constant dense<0.000000e+00> : vector<1x8x8xf32>
    %10 = tpu.matmul %8, %5, %cst_5 {dimension_numbers = #tpu.dot_dimension_numbers<[2], [2], [1], [1], [0, 0, 0, 1, 1, 1], [0], [0]>} : vector<1x8x32xf32>, vector<1x8x32xf32>, vector<1x8x8xf32> -> vector<1x8x8xf32>
    "tpu.trace_stop"() : () -> ()
    %11 = tpu.iota {dimensions = array<i32: 0>} : vector<8x8xi32>
    %12 = tpu.iota {dimensions = array<i32: 1>} : vector<8x8xi32>
    %13 = arith.cmpi sle, %12, %11 : vector<8x8xi32>
    %14 = vector.shape_cast %13 : vector<8x8xi1> to vector<1x8x8xi1>
    %cst_6 = arith.constant 0xFF800000 : f32
    %15 = vector.broadcast %cst_6 : f32 to vector<1x8x8xf32>
    %16 = arith.select %14, %10, %15 : vector<1x8x8xi1>, vector<1x8x8xf32>
    %cst_7 = arith.constant dense<0xFF800000> : vector<1x8xf32>
    %17 = vector.multi_reduction <maximumf>, %16, %cst_7 [2] : vector<1x8x8xf32> to vector<1x8xf32>
    %18 = vector.shape_cast %17 : vector<1x8xf32> to vector<1x8x1xf32>
    %19 = vector.broadcast %18 : vector<1x8x1xf32> to vector<1x8x8xf32>
    %20 = arith.subf %16, %19 : vector<1x8x8xf32>
    %21 = math.exp %20 : vector<1x8x8xf32>
    %cst_8 = arith.constant dense<0.000000e+00> : vector<1x8xf32>
    %22 = vector.multi_reduction <add>, %21, %cst_8 [2] : vector<1x8x8xf32> to vector<1x8xf32>
    %23 = vector.shape_cast %22 : vector<1x8xf32> to vector<1x8x1xf32>
    %24 = tpu.reciprocal %23 : vector<1x8x1xf32> -> vector<1x8x1xf32>
    "tpu.trace_start"() <{level = 10 : i32, message = "bqk,bkd->bqd"}> : () -> ()
    %cst_9 = arith.constant dense<0.000000e+00> : vector<1x8x32xf32>
    %25 = tpu.matmul %21, %9, %cst_9 {dimension_numbers = #tpu.dot_dimension_numbers<[2], [1], [1], [2], [0, 0, 0, 1, 1, 2], [0], [0]>} : vector<1x8x8xf32>, vector<1x8x32xf32>, vector<1x8x32xf32> -> vector<1x8x32xf32>
    "tpu.trace_stop"() : () -> ()
    %26 = vector.broadcast %24 : vector<1x8x1xf32> to vector<1x8x32xf32>
    %27 = arith.mulf %25, %26 : vector<1x8x32xf32>
    %c0_10 = arith.constant 0 : index
    %c0_11 = arith.constant 0 : index
    %c0_12 = arith.constant 0 : index
    %28 = vector.load %arg3[%c0_10, %c0_11, %c0_12] : memref<1x8x32xf32, #tpu.memory_space<vmem>>, vector<1x8x32xf32>
    tpu.vector_store %arg3[%c0_10, %c0_11, %c0_12], %27 {strides = array<i32>} : memref<1x8x32xf32, #tpu.memory_space<vmem>>, vector<1x8x32xf32>,
    return
  }
  func.func @transform_0(%arg0: i32) -> (i32, i32, i32) {
    %c0_i32 = arith.constant 0 : i32
    %c0_i32_0 = arith.constant 0 : i32
    %c0_i32_1 = arith.constant 0 : i32
    return %arg0, %c0_i32, %c0_i32_0 : i32, i32, i32
  }
  func.func @transform_1(%arg0: i32) -> (i32, i32) {
    %c0_i32 = arith.constant 0 : i32
    %c0_i32_0 = arith.constant 0 : i32
    %c0_i32_1 = arith.constant 0 : i32
    return %c0_i32, %c0_i32_0 : i32, i32
  }
  func.func @transform_2(%arg0: i32) -> (i32, i32, i32) {
    %c0_i32 = arith.constant 0 : i32
    %c0_i32_0 = arith.constant 0 : i32
    %c0_i32_1 = arith.constant 0 : i32
    return %arg0, %c0_i32, %c0_i32_0 : i32, i32, i32
  }
}

</mosaic_0001>

<llo_original>
// kernel: head_forward.1
$region0: #{head_forward.1}
  #allocation0 [shape = 'u32[]', space=smem, size = 0x4, offset = 0x4, fixed_abs, tag = 'smem constant byte address 0x4 - core index']
  #allocation1 [shape = 'u32[72,128]{1,0:T(1,128)}', space=vmem, size = 0x9000, scoped, tag = 'internal scratch']
  %s0 = inlined_call_operand.vmem [shape: f32[2,8,128], index: 0, kind: input, shape index: {}]
  %s1 = inlined_call_operand.vmem [shape: f32[128,96], index: 1, kind: input, shape index: {}]
  %s2 = inlined_call_operand.hbm [shape: f32[2,8,32], index: 2, kind: output, shape index: {}]
  %s3 = sld [smem:[#allocation0]]
  $region41: #{head_forward.1} parent=0
    _
  %s5 = ssub.s32 1, %s3
  %s6 = scalar_select 0, %s5, %s3
  $region1: #{head_forward.1} parent=0
    #allocation2 [shape = 'u8[8192]{0}', space=vmem, size = 0x2000, scoped, tag = 'output window, operand 0']
    #allocation3 [shape = 's32[2]{0}', space=sflag, size = 0x8, scoped, tag = 'scoped memory for head_forward.1']
    %7 = vsyncpa [#allocation3], 0
    %s8 = scalar_lea.sflag [#allocation3], 1
    %9 = vsyncpa %s8, 0
    loop: start=0, step=1, limit=4
    $region2: #{head_forward.1} parent=1 // loop_pre_header
      _
    $region3: #{head_forward.1} parent=1 // loop_header
      %s11 = sphi 0, %s15
      %p12 = scmp.ge.s32.totalorder %s11, 4
      %s21 = sphi 0, %s23
      %s24 = sphi 0, %s21
      %s25 = sphi 0, %s24
      %s41 = sphi 0, %s25
      %s45 = sphi 0, %s45
      %s47 = sphi 0, %s45
      %s48 = sphi 0, %s47
      %s62 = sphi 0, %s48
      %s68 = sphi 0, %s70
      %s71 = sphi 0, %s68
      %s72 = sphi 0, %s71
      %s88 = sphi 0, %s72
    $region4: #{head_forward.1} parent=1 // loop_header_branch
      %14 = sbr.rel (%p12) target = $region8
    $region5: #{head_forward.1} parent=1 // loop_body
      %s16 = ssub.s32 %s11, 1
      %s17 = ssub.s32 %s11, 2
      %s18 = sadd.s32 %s11, 1
      %s19 = ssub.s32 %s11, %s18
      %p20 = scmp.eq.s32.totalorder %s19, 0
      %s22 = sadd.s32 %s21, 1
      %s23 = scalar_select %p20, %s21, %s22
      %p26 = pneg %p20
      %p27 = scmp.eq.s32.totalorder %s11, 1
      %p28 = por %p26, %p27
      %p29 = scmp.ne.s32.totalorder %s21, %s24
      %p30 = scmp.eq.s32.totalorder %s11, 0
      %p31 = por %p29, %p30
      %p32 = scmp.ne.s32.totalorder %s21, %s24
      %p33 = scmp.eq.s32.totalorder %s16, 1
      %p34 = por %p32, %p33
      %p35 = scmp.ne.s32.totalorder %s24, %s25
      %p36 = scmp.eq.s32.totalorder %s16, 0
      %p37 = por %p35, %p36
      %p38 = scmp.ne.s32.totalorder %s24, %s25
      %p39 = scmp.eq.s32.totalorder %s17, 1
      %p40 = por %p38, %p39
      %p42 = scmp.ne.s32.totalorder %s25, %s41
      %p43 = scmp.eq.s32.totalorder %s17, 0
      %p44 = por %p42, %p43
      %s46 = sadd.s32 %s45, 1
      %p49 = scmp.eq.s32.totalorder %s11, 1
      %p50 = scmp.ne.s32.totalorder %s45, %s47
      %p51 = scmp.eq.s32.totalorder %s11, 0
      %p52 = por %p50, %p51
      %p53 = scmp.ne.s32.totalorder %s45, %s47
      %p54 = scmp.eq.s32.totalorder %s16, 1
      %p55 = por %p53, %p54
      %p56 = scmp.ne.s32.totalorder %s47, %s48
      %p57 = scmp.eq.s32.totalorder %s16, 0
      %p58 = por %p56, %p57
      %p59 = scmp.ne.s32.totalorder %s47, %s48
      %p60 = scmp.eq.s32.totalorder %s17, 1
      %p61 = por %p59, %p60
      %p63 = scmp.ne.s32.totalorder %s48, %s62
      %p64 = scmp.eq.s32.totalorder %s17, 0
      %p65 = por %p63, %p64
      %s66 = ssub.s32 %s11, %s18
      %p67 = scmp.eq.s32.totalorder %s66, 0
      %s69 = sadd.s32 %s68, 1
      %s70 = scalar_select %p67, %s68, %s69
      %p73 = pneg %p67
      %p74 = scmp.eq.s32.totalorder %s11, 1
      %p75 = por %p73, %p74
      %p76 = scmp.ne.s32.totalorder %s68, %s71
      %p77 = scmp.eq.s32.totalorder %s11, 0
      %p78 = por %p76, %p77
      %p79 = scmp.ne.s32.totalorder %s68, %s71
      %p80 = scmp.eq.s32.totalorder %s16, 1
      %p81 = por %p79, %p80
      %p82 = scmp.ne.s32.totalorder %s71, %s72
      %p83 = scmp.eq.s32.totalorder %s16, 0
      %p84 = por %p82, %p83
      %p85 = scmp.ne.s32.totalorder %s71, %s72
      %p86 = scmp.eq.s32.totalorder %s17, 1
      %p87 = por %p85, %p86
      %p89 = scmp.ne.s32.totalorder %s72, %s88
      %p90 = scmp.eq.s32.totalorder %s17, 0
      %p91 = por %p89, %p90
      %p92 = scmp.le.s32.totalorder 1, %s11
      %p93 = scmp.lt.s32.totalorder %s11, 3
      %p94 = pnand %p92, %p93
      %p95 = pneg %p94
      // Predicated region
      $region9: #{head_forward.1} parent=5 // pred_check
        _
      $region10: #{head_forward.1} parent=5 // pred_check_branch
        %97 = sbr.rel (%p94) target = $region12
      $region11: #{head_forward.1} parent=5 // pred_region
        %s98 = ssub.s32 %s11, 1
        // Predicated region
        $region13: #{head_forward.1} parent=11 // pred_check
          %p99 = pneg %p58
        $region14: #{head_forward.1} parent=11 // pred_check_branch
          %101 = sbr.rel (%p99) target = $region16
        $region15: #{head_forward.1} parent=11 // pred_region
          _
        $region16: #{head_forward.1} parent=11 // pred_fallthru
          _
      $region12: #{head_forward.1} parent=5 // pred_fallthru
        _
      %p102 = scmp.lt.s32.totalorder %s11, 2
      // Predicated region
      $region17: #{head_forward.1} parent=5 // pred_check
        %p103 = pneg %p102
      $region18: #{head_forward.1} parent=5 // pred_check_branch
        %105 = sbr.rel (%p103) target = $region20
      $region19: #{head_forward.1} parent=5 // pred_region
        // Predicated region
        $region21: #{head_forward.1} parent=19 // pred_check
          %p106 = pneg %p31
        $region22: #{head_forward.1} parent=19 // pred_check_branch
          %108 = sbr.rel (%p106) target = $region24
        $region23: #{head_forward.1} parent=19 // pred_region
          %p109 = scmp.lt.s32.totalorder %s11, 1
          %s110 = scalar_select %p109, %s11, 1
          %s111 = smul.addr %s110, 8
          %s112 = scalar_lea.vmem %s0, %s111
        $region24: #{head_forward.1} parent=19 // pred_fallthru
          _
      $region20: #{head_forward.1} parent=5 // pred_fallthru
        _
      %p113 = scmp.le.s32.totalorder 1, %s11
      %p114 = scmp.lt.s32.totalorder %s11, 3
      %p115 = pnand %p113, %p114
      %p116 = pneg %p115
      // Predicated region
      $region25: #{head_forward.1} parent=5 // pred_check
        _
      $region26: #{head_forward.1} parent=5 // pred_check_branch
        %118 = sbr.rel (%p115) target = $region28
      $region27: #{head_forward.1} parent=5 // pred_region
        %s119 = ssub.s32 %s11, 1
        %p120 = scmp.lt.s32.totalorder %s16, 1
        %s121 = scalar_select %p120, %s16, 1
        %s122 = smul.addr %s121, 8
        %s123 = scalar_lea.vmem %s0, %s122
        %p124 = pneg %p37
        %p125 = pneg %p34
        %p126 = pneg %p58
        %p127 = pneg %p55
        %p128 = pneg %p84
        %p129 = pneg %p81
        %s130 = sand.u32 %s71, 1
        %s131 = scalar_lea.sflag [#allocation3], %s130
        %s132 = sand.u32 %s71, 1
        %s133 = smul.addr %s132, 8
        %s134 = scalar_lea.vmem [#allocation2], %s133
        %p135 = scmp.lt.s32.totalorder %s16, 1
        %s136 = scalar_select %p135, %s16, 1
        %s137 = smul.addr %s136, 8
        %s138 = scalar_lea.vmem %s0, %s137
        %v139 = vld [vmem:[%s138] sm:$0xff]
        %v140 = vld [vmem:[%s1] sm:$0xff]
        %v141 = vld [vmem:[%s1 + $0x8] sm:$0xff]
        %v142 = vld [vmem:[%s1 + $0x10] sm:$0xff]
        %v143 = vld [vmem:[%s1 + $0x18] sm:$0xff]
        %v144 = vld [vmem:[%s1 + $0x20] sm:$0xff]
        %v145 = vld [vmem:[%s1 + $0x28] sm:$0xff]
        %v146 = vld [vmem:[%s1 + $0x30] sm:$0xff]
        %v147 = vld [vmem:[%s1 + $0x38] sm:$0xff]
        %v148 = vld [vmem:[%s1 + $0x40] sm:$0xff]
        %v149 = vld [vmem:[%s1 + $0x48] sm:$0xff]
        %v150 = vld [vmem:[%s1 + $0x50] sm:$0xff]
        %v151 = vld [vmem:[%s1 + $0x58] sm:$0xff]
        %v152 = vld [vmem:[%s1 + $0x60] sm:$0xff]
        %v153 = vld [vmem:[%s1 + $0x68] sm:$0xff]
        %v154 = vld [vmem:[%s1 + $0x70] sm:$0xff]
        %v155 = vld [vmem:[%s1 + $0x78] sm:$0xff]
        %156 = vmatpush.msra.mxu0 %v155
        %157 = vmatpush.msra.mxu0 %v154
        %158 = vmatpush.msra.mxu0 %v153
        %159 = vmatpush.msra.mxu0 %v152
        %160 = vmatpush.msra.mxu0 %v151
        %161 = vmatpush.msra.mxu0 %v150
        %162 = vmatpush.msra.mxu0 %v149
        %163 = vmatpush.msra.mxu0 %v148
        %164 = vmatpush.msra.mxu0 %v147
        %165 = vmatpush.msra.mxu0 %v146
        %166 = vmatpush.msra.mxu0 %v145
        %167 = vmatpush.msra.mxu0 %v144
        %168 = vmatpush.msra.mxu0 %v143
        %169 = vmatpush.msra.mxu0 %v142
        %170 = vmatpush.msra.mxu0 %v141
        %171 = vmatpush.msra.mxu0 %v140
        %172 = vmatmul.f32.gmra.mxu0 %v139
        %v173 = vpop.f32.mrf.mxu0
        %v174 = vadd.f32 0.0, %v173
        %175 = vdwg.mxu0
        %v176 = vmul.f32 %v174, 0.088388346
        %178 = vrot.lane.b32.xlu0 %v176, 96
        %v179 = vpop.permute.xlu0 %178
        %vm180 = vcmask 261120
        %v181 = vsel %vm180, %v179, 0
        %v184 = vsel %vm180, %v174, 0
        %186 = vmatpush.xpose.msra.mxu0 0.0
        %187 = vmatpush.xpose.msra.mxu0 0.0
        %188 = vmatpush.xpose.msra.mxu0 0.0
        %189 = vmatpush.xpose.msra.mxu0 0.0
        %190 = vmatpush.xpose.msra.mxu0 0.0
        %191 = vmatpush.xpose.msra.mxu0 0.0
        %192 = vmatpush.xpose.msra.mxu0 0.0
        %193 = vmatpush.xpose.msra.mxu0 0.0
        %194 = vmatpush.xpose.msra.mxu0 0.0
        %195 = vmatpush.xpose.msra.mxu0 0.0
        %196 = vmatpush.xpose.msra.mxu0 0.0
        %197 = vmatpush.xpose.msra.mxu0 0.0
        %198 = vmatpush.xpose.msra.mxu0 0.0
        %199 = vmatpush.xpose.msra.mxu0 0.0
        %200 = vmatpush.xpose.msra.mxu0 0.0
        %201 = vmatpush.xpose.msra.mxu0 %v184
        %202 = vmatmul.f32.gmra.mxu0 %v181
        %v203 = vpop.f32.mrf.mxu0
        %v204 = vadd.f32 0.0, %v203
        %205 = vdwg.mxu0
        %v206 = vlaneseq
        %v207 = vshrl.u32 %v206, 7
        %v208 = vlaneseq
        %v209 = vand.u32 %v208, 127
        %vm210 = vcmp.le.s32.totalorder %v209, %v207
        %v211 = vsel %vm210, %v204, -inf
        %vm212 = vcmask 64512
        %v213 = vsel %vm212, %v211, -inf
        %214 = vmax.xlane.f32.xlu0 %v213
        %v215 = vpop.xlane.xlu0 %214
        %v216 = vsub.f32 %v211, %v215
        %v217 = vmul.f32 %v216, 1.442695
        %v218 = vpow.pop %v217
        %v219 = vsel %vm212, %v218, 0.0
        %220 = vadd.xlane.f32.xlu0 %v219
        %v221 = vpop.xlane.xlu0 %220
        %v222 = vrcp.pop %v221
        %v223 = vmul.f32 %v221, %v222
        %v224 = vsub.f32 1.0, %v223
        %v225 = vmul.f32 %v222, %v224
        %v226 = vadd.f32 %v222, %v225
        %vm227 = vweird.f32 %v221
        %vm228 = vweird.f32 %v222
        %vm229 = vmor %vm227, %vm228
        %v230 = vsel %vm229, %v222, %v226
        %v231 = vand.u32 2147483647, %v221
        %vm232 = vcmp.eq.f32.partialorder %v231, 8.507059e+37
        %v233 = vand.u32 %v221, 2147483648
        %v234 = vor.u32 1.1754944e-38, %v233
        %v235 = vsel %vm232, %v234, %v230
        %236 = vrot.lane.b32.xlu0 %v174, 64
        %v237 = vpop.permute.xlu0 %236
        %v240 = vsel %vm212, %v218, 0
        %242 = vmatpush.msra.mxu0 0.0
        %243 = vmatpush.msra.mxu0 0.0
        %244 = vmatpush.msra.mxu0 0.0
        %245 = vmatpush.msra.mxu0 0.0
        %246 = vmatpush.msra.mxu0 0.0
        %247 = vmatpush.msra.mxu0 0.0
        %248 = vmatpush.msra.mxu0 0.0
        %249 = vmatpush.msra.mxu0 0.0
        %250 = vmatpush.msra.mxu0 0.0
        %251 = vmatpush.msra.mxu0 0.0
        %252 = vmatpush.msra.mxu0 0.0
        %253 = vmatpush.msra.mxu0 0.0
        %254 = vmatpush.msra.mxu0 0.0
        %255 = vmatpush.msra.mxu0 0.0
        %256 = vmatpush.msra.mxu0 0.0
        %257 = vmatpush.msra.mxu0 %v237
        %258 = vmatmul.f32.gmra.mxu0 %v240
        %v259 = vpop.f32.mrf.mxu0
        %v260 = vadd.f32 0.0, %v259
        %261 = vdwg.mxu0
        %v262 = vmul.f32 %v260, %v235
        %263 = vst.msk [vmem:[%s134] sm:$0xff] %vm180, %v262
        %s264 = sand.u32 %s71, 1
        %s265 = scalar_lea.sflag [#allocation3], %s264
        %s266 = sand.u32 %s71, 1
        %s267 = smul.addr %s266, 8
        %s268 = scalar_lea.vmem [#allocation2], %s267
        // Predicated region
        $region29: #{head_forward.1} parent=27 // pred_check
          %p269 = pneg %p81
        $region30: #{head_forward.1} parent=27 // pred_check_branch
          %271 = sbr.rel (%p269) target = $region32
        $region31: #{head_forward.1} parent=27 // pred_region
          %273 = vsyncadd %s265, 0
          %s274 = smul.addr %s16, 8
          %s275 = scalar_lea.hbm %s2, %s274
          %s277 = sshll.u32 %s268, 4
          %s278 = int_to_ptr.vmem [resolvable:$true] %s277
          %s279 = sshll.u32 %s275, 4
          %s280 = int_to_ptr.hbm [resolvable:$true] %s279
          %282 = dma.vmem_to_hbm [thread:$0]  %s278, 128, %s280, %s265
        $region32: #{head_forward.1} parent=27 // pred_fallthru
          _
      $region28: #{head_forward.1} parent=5 // pred_fallthru
        _
      %p283 = scmp.le.s32.totalorder 2, %s11
      // Predicated region
      $region33: #{head_forward.1} parent=5 // pred_check
        %p284 = pneg %p283
      $region34: #{head_forward.1} parent=5 // pred_check_branch
        %286 = sbr.rel (%p284) target = $region36
      $region35: #{head_forward.1} parent=5 // pred_region
        %s287 = ssub.s32 %s11, 2
        // Predicated region
        $region37: #{head_forward.1} parent=35 // pred_check
          %p288 = pneg %p87
        $region38: #{head_forward.1} parent=35 // pred_check_branch
          %290 = sbr.rel (%p288) target = $region40
        $region39: #{head_forward.1} parent=35 // pred_region
          %s291 = sand.u32 %s72, 1
          %s292 = scalar_lea.sflag [#allocation3], %s291
          %s293 = sand.u32 %s72, 1
          %s294 = smul.addr %s293, 8
          %s295 = scalar_lea.vmem [#allocation2], %s294
          %297 = dma.done %s292, 128
        $region40: #{head_forward.1} parent=35 // pred_fallthru
          _
      $region36: #{head_forward.1} parent=5 // pred_fallthru
        _
    $region6: #{head_forward.1} parent=1 // loop_footer
      %s15 = sadd.s32 1, %s11
    $region7: #{head_forward.1} parent=1 // loop_footer_branch
      %10 = sbr.rel target = $region3
    $region8: #{head_forward.1} parent=1 // loop_exit
      _
    %298 = vsyncpa [#allocation3], 1
    %s299 = scalar_lea.sflag [#allocation3], 1
    %300 = vsyncpa %s299, 1

</llo_original>
